<compile_context>
chip_gen: v7x
topology: tpu7x:2x2x1
jax: 0.10.0
libtpu: 0.0.40
codegen_flags: <defaults>
</compile_context>

<pallas_src>
from functools import partial

import jax
import jax.numpy as jnp
from jax.experimental import pallas as pl
from jax.experimental.pallas import tpu as pltpu

LANE = 128        # padded feature width (hidden / cat-hidden / actions)
SUBLANE = 8       # f32 sublane granularity
TILE_B_MAX = 256  # batch tile for the grid (fills the 256-wide MXU M dim on v6e/v7x)


def reinforce_kernel(x_ref, y_ref,            # (tb, in_sz) f32, (tb, 2) f32
                     w1_ref,                  # (in_sz, 128) bf16   fc1 weight (padded)
                     w0_ref,                  # (2, 128)     f32    fc0 weight rows (padded, VPU path)
                     b_in_ref,                # (1, 128)     f32    fc1 | fc0 biases
                     w2_ref, b2_ref,          # (128, 128) bf16, (1, 128) f32
                     w3_ref, b3_ref,          # (128, 128) bf16, (1, 128) f32
                     out_ref,                 # (tb, 128) f32 softmax probs (padded lanes = 0)
                     *, nr_actions):
    f32 = jnp.float32
    bf16 = jnp.bfloat16

    # fc1 on the MXU (bf16 single-pass, K = in_sz) ...
    h1 = jnp.dot(x_ref[...].astype(bf16), w1_ref[...], preferred_element_type=f32)
    # ... fc0 on the VPU: two broadcast FMAs over y's 2 features (a K=2 matmul would
    # waste an MXU push); disjoint lanes, shared relu below == relu of each sub-output.
    y = y_ref[...]
    h1 = h1 + y[:, 0:1] * w0_ref[0:1, :] + y[:, 1:2] * w0_ref[1:2, :] + b_in_ref[...]
    h1 = jnp.maximum(h1, 0.0)                                   # padded lanes stay exactly 0

    # fc2 + relu (padded hidden lanes stay exactly 0)
    h2 = jnp.dot(h1.astype(bf16), w2_ref[...], preferred_element_type=f32) + b2_ref[...]
    h2 = jnp.maximum(h2, 0.0)

    # fc3
    logits = jnp.dot(h2.astype(bf16), w3_ref[...], preferred_element_type=f32) + b3_ref[...]

    # mask padded action lanes with a static iota (robust alternative to the -1e30 bias trick)
    col = jax.lax.broadcasted_iota(jnp.int32, logits.shape, 1)
    logits = jnp.where(col < nr_actions, logits, -1e30)

    # softmax over dim=1; exact divide so rows sum to 1 to f32 precision
    m = jnp.max(logits, axis=1, keepdims=True)
    e = jnp.exp(logits - m)
    out_ref[...] = e / jnp.sum(e, axis=1, keepdims=True)


def prepare_params(params, pad=LANE):
    """One-time: transpose, pad to lane-dense 128, cast matmul weights to bf16."""
    (w1, b1, w0, b0, w2, b2, w3, b3) = params        # PyTorch layout: W is (out, in)
    hid_sz, in_sz = w1.shape
    fc0_out = w0.shape[0]                            # derived, not hard-coded
    cat_sz = hid_sz + fc0_out
    nr_actions = w3.shape[0]
    assert cat_sz <= pad and nr_actions <= pad and hid_sz <= pad

    # fc1, padded, bf16 (MXU)
    w1p = jnp.zeros((in_sz, pad), jnp.float32).at[:, :hid_sz].set(w1.T).astype(jnp.bfloat16)
    # fc0, padded rows, f32 (VPU broadcast FMAs)
    w0p = jnp.zeros((2, pad), jnp.float32).at[:, hid_sz:cat_sz].set(w0.T)
    # fused biases for the first hidden block
    b_in = (jnp.zeros((1, pad), jnp.float32)
            .at[0, :hid_sz].set(b1)
            .at[0, hid_sz:cat_sz].set(b0))

    # fc2, padded, bf16; zero pad rows/cols + zero bias => relu keeps padded lanes 0
    w2p = jnp.zeros((pad, pad), jnp.float32).at[:cat_sz, :hid_sz].set(w2.T).astype(jnp.bfloat16)
    b2p = jnp.zeros((1, pad), jnp.float32).at[0, :hid_sz].set(b2)

    # fc3, padded, bf16; padded action lanes are masked inside the kernel
    w3p = jnp.zeros((pad, pad), jnp.float32).at[:hid_sz, :nr_actions].set(w3.T).astype(jnp.bfloat16)
    b3p = jnp.zeros((1, pad), jnp.float32).at[0, :nr_actions].set(b3)

    return (w1p, w0p, b_in, w2p, b2p, w3p, b3p)


@partial(jax.jit, static_argnames=("nr_actions",))
def reinforce_forward(x, y, prepared, *, nr_actions):
    """x: (B, in_sz) f32, y: (B, 2) f32. Returns softmax probs (B, nr_actions)."""
    (w1p, w0p, b_in, w2p, b2p, w3p, b3p) = prepared
    B, in_sz = x.shape
    pad = w1p.shape[1]

    # choose a batch tile: one block for small B, TILE_B_MAX-row tiles for big batches
    if B <= TILE_B_MAX:
        tile_b = max(SUBLANE, ((B + SUBLANE - 1) // SUBLANE) * SUBLANE)
    else:
        tile_b = TILE_B_MAX
    Bp = ((B + tile_b - 1) // tile_b) * tile_b
    if Bp != B:
        x = jnp.pad(x, ((0, Bp - B), (0, 0)))
        y = jnp.pad(y, ((0, Bp - B), (0, 0)))
    grid = (Bp // tile_b,)

    kernel = partial(reinforce_kernel, nr_actions=nr_actions)

    out = pl.pallas_call(
        kernel,
        out_shape=jax.ShapeDtypeStruct((Bp, pad), jnp.float32),
        grid=grid,
        in_specs=[
            pl.BlockSpec((tile_b, in_sz), lambda i: (i, 0)),   # x: tiled over batch
            pl.BlockSpec((tile_b, 2),     lambda i: (i, 0)),   # y: tiled over batch
            pl.BlockSpec(w1p.shape,  lambda i: (0, 0)),        # weights pinned in VMEM
            pl.BlockSpec(w0p.shape,  lambda i: (0, 0)),
            pl.BlockSpec(b_in.shape, lambda i: (0, 0)),
            pl.BlockSpec(w2p.shape,  lambda i: (0, 0)),
            pl.BlockSpec(b2p.shape,  lambda i: (0, 0)),
            pl.BlockSpec(w3p.shape,  lambda i: (0, 0)),
            pl.BlockSpec(b3p.shape,  lambda i: (0, 0)),
        ],
        out_specs=pl.BlockSpec((tile_b, pad), lambda i: (i, 0)),   # lane-dense store
        compiler_params=pltpu.CompilerParams(
            dimension_semantics=("parallel",)),                    # megacore-shardable on v7x
    )(x, y, w1p, w0p, b_in, w2p, b2p, w3p, b3p)

    # TODO(synk): fuse categorical sampling / chosen-action log-prob into the kernel and
    # return those directly instead of slicing the lane-sparse (B, nr_actions) probs.
    return out[:B, :nr_actions]


def init_params(key, in_sz, nr_actions, hid_sz):
    """Deterministic init mimicking nn.Linear default (uniform +/- 1/sqrt(fan_in))."""
    def linear(key, out_f, in_f):
        kw, kb = jax.random.split(key)
        bound = 1.0 / jnp.sqrt(jnp.float32(in_f))
        w = jax.random.uniform(kw, (out_f, in_f), jnp.float32, -bound, bound)
        b = jax.random.uniform(kb, (out_f,), jnp.float32, -bound, bound)
        return w, b

    k1, k0, k2, k3 = jax.random.split(key, 4)
    w1, b1 = linear(k1, hid_sz, in_sz)            # fc1
    w0, b0 = linear(k0, 12, 2)                    # fc0
    w2, b2 = linear(k2, hid_sz, hid_sz + 12)      # fc2
    w3, b3 = linear(k3, nr_actions, hid_sz)       # fc3
    return (w1, b1, w0, b0, w2, b2, w3, b3)


def reference_forward(x, y, params):
    (w1, b1, w0, b0, w2, b2, w3, b3) = params
    hx = jax.nn.relu(x @ w1.T + b1)
    hy = jax.nn.relu(y @ w0.T + b0)
    h = jnp.concatenate([hx, hy], axis=1)
    h = jax.nn.relu(h @ w2.T + b2)
    logits = h @ w3.T + b3
    return jax.nn.softmax(logits, axis=1)


if __name__ == "__main__":
    B, in_sz, hid_sz, nr_actions = 8, 16, 32, 4

    key = jax.random.PRNGKey(0)
    kx, ky, kp = jax.random.split(key, 3)
    x = jax.random.normal(kx, (B, in_sz), jnp.float32)
    y = jax.random.normal(ky, (B, 2), jnp.float32)
    params = init_params(kp, in_sz, nr_actions, hid_sz)

    prepared = prepare_params(params)                       # one-time prep (transpose/pad/bf16)
    prepared = jax.tree_util.tree_map(jax.block_until_ready, prepared)

    probs = reinforce_forward(x, y, prepared, nr_actions=nr_actions)
    probs = jax.block_until_ready(probs)

    ref = reference_forward(x, y, params)                   # pure f32 reference
    assert probs.shape == (B, nr_actions)
    # bf16 matmul weights => relaxed tolerance vs the f32 reference
    assert jnp.allclose(probs, ref, atol=1.5e-2, rtol=1.5e-2), "mismatch vs reference"
    # exact divide in the kernel => rows sum to 1 tightly
    assert jnp.allclose(jnp.sum(probs, axis=1), 1.0, atol=1e-5), "rows must sum to ~1"

    print("KERNEL_OK")
</pallas_src>

<mosaic_0001>
module attributes {stable_mosaic.version = 11 : i64} {
  func.func @reinforce_kernel(%arg0: i32, %arg1: memref<8x16xf32, #tpu.memory_space<vmem>>, %arg2: memref<8x2xf32, #tpu.memory_space<vmem>>, %arg3: memref<16x128xbf16, #tpu.memory_space<vmem>>, %arg4: memref<2x128xf32, #tpu.memory_space<vmem>>, %arg5: memref<1x128xf32, #tpu.memory_space<vmem>>, %arg6: memref<128x128xbf16, #tpu.memory_space<vmem>>, %arg7: memref<1x128xf32, #tpu.memory_space<vmem>>, %arg8: memref<128x128xbf16, #tpu.memory_space<vmem>>, %arg9: memref<1x128xf32, #tpu.memory_space<vmem>>, %arg10: memref<8x128xf32, #tpu.memory_space<vmem>>) attributes {dimension_semantics = [#tpu.dimension_semantics<parallel>], iteration_bounds = array<i64: 1>, scalar_prefetch = 0 : i64, scratch_operands = 0 : i64, tpu.core_type = #tpu.core_type<tc>, window_params = [{transform_indices = @transform_0, window_bounds = array<i64: 8, 16>}, {transform_indices = @transform_1, window_bounds = array<i64: 8, 2>}, {pipeline_mode = #tpu.pipeline_mode<synchronous>, transform_indices = @transform_2, window_bounds = array<i64: 16, 128>}, {pipeline_mode = #tpu.pipeline_mode<synchronous>, transform_indices = @transform_3, window_bounds = array<i64: 2, 128>}, {pipeline_mode = #tpu.pipeline_mode<synchronous>, transform_indices = @transform_4, window_bounds = array<i64: 1, 128>}, {pipeline_mode = #tpu.pipeline_mode<synchronous>, transform_indices = @transform_5, window_bounds = array<i64: 128, 128>}, {pipeline_mode = #tpu.pipeline_mode<synchronous>, transform_indices = @transform_6, window_bounds = array<i64: 1, 128>}, {pipeline_mode = #tpu.pipeline_mode<synchronous>, transform_indices = @transform_7, window_bounds = array<i64: 128, 128>}, {pipeline_mode = #tpu.pipeline_mode<synchronous>, transform_indices = @transform_8, window_bounds = array<i64: 1, 128>}, {transform_indices = @transform_9, window_bounds = array<i64: 8, 128>}]} {
    %c0 = arith.constant 0 : index
    %c0_0 = arith.constant 0 : index
    %0 = vector.load %arg1[%c0, %c0_0] : memref<8x16xf32, #tpu.memory_space<vmem>>, vector<8x16xf32>
    %1 = arith.truncf %0 : vector<8x16xf32> to vector<8x16xbf16>
    %c0_1 = arith.constant 0 : index
    %c0_2 = arith.constant 0 : index
    %2 = vector.load %arg3[%c0_1, %c0_2] : memref<16x128xbf16, #tpu.memory_space<vmem>>, vector<16x128xbf16>
    %cst = arith.constant dense<0.000000e+00> : vector<8x128xf32>
    %3 = tpu.matmul %1, %2, %cst {dimension_numbers = #tpu.dot_dimension_numbers<[1], [0], [0], [1], [0, 0, 1, 1], [], []>} : vector<8x16xbf16>, vector<16x128xbf16>, vector<8x128xf32> -> vector<8x128xf32>
    %c0_3 = arith.constant 0 : index
    %c0_4 = arith.constant 0 : index
    %4 = vector.load %arg2[%c0_3, %c0_4] : memref<8x2xf32, #tpu.memory_space<vmem>>, vector<8x2xf32>
    %5 = vector.extract_strided_slice %4 {offsets = [0, 0], sizes = [8, 1], strides = [1, 1]} : vector<8x2xf32> to vector<8x1xf32>
    %c0_5 = arith.constant 0 : index
    %c0_6 = arith.constant 0 : index
    %6 = vector.load %arg4[%c0_5, %c0_6] : memref<2x128xf32, #tpu.memory_space<vmem>>, vector<1x128xf32>
    %7 = vector.broadcast %5 : vector<8x1xf32> to vector<8x128xf32>
    %8 = vector.broadcast %6 : vector<1x128xf32> to vector<8x128xf32>
    %9 = arith.mulf %7, %8 : vector<8x128xf32>
    %10 = arith.addf %3, %9 : vector<8x128xf32>
    %11 = vector.extract_strided_slice %4 {offsets = [0, 1], sizes = [8, 1], strides = [1, 1]} : vector<8x2xf32> to vector<8x1xf32>
    %c1 = arith.constant 1 : index
    %c0_7 = arith.constant 0 : index
    %12 = vector.load %arg4[%c1, %c0_7] : memref<2x128xf32, #tpu.memory_space<vmem>>, vector<1x128xf32>
    %13 = vector.broadcast %11 : vector<8x1xf32> to vector<8x128xf32>
    %14 = vector.broadcast %12 : vector<1x128xf32> to vector<8x128xf32>
    %15 = arith.mulf %13, %14 : vector<8x128xf32>
    %16 = arith.addf %10, %15 : vector<8x128xf32>
    %c0_8 = arith.constant 0 : index
    %c0_9 = arith.constant 0 : index
    %17 = vector.load %arg5[%c0_8, %c0_9] : memref<1x128xf32, #tpu.memory_space<vmem>>, vector<1x128xf32>
    %18 = vector.broadcast %17 : vector<1x128xf32> to vector<8x128xf32>
    %19 = arith.addf %16, %18 : vector<8x128xf32>
    %cst_10 = arith.constant 0.000000e+00 : f32
    %20 = vector.broadcast %cst_10 : f32 to vector<8x128xf32>
    %21 = arith.maximumf %19, %20 : vector<8x128xf32>
    %22 = arith.truncf %21 : vector<8x128xf32> to vector<8x128xbf16>
    %c0_11 = arith.constant 0 : index
    %c0_12 = arith.constant 0 : index
    %23 = vector.load %arg6[%c0_11, %c0_12] : memref<128x128xbf16, #tpu.memory_space<vmem>>, vector<128x128xbf16>
    %cst_13 = arith.constant dense<0.000000e+00> : vector<8x128xf32>
    %24 = tpu.matmul %22, %23, %cst_13 {dimension_numbers = #tpu.dot_dimension_numbers<[1], [0], [0], [1], [0, 0, 1, 1], [], []>} : vector<8x128xbf16>, vector<128x128xbf16>, vector<8x128xf32> -> vector<8x128xf32>
    %c0_14 = arith.constant 0 : index
    %c0_15 = arith.constant 0 : index
    %25 = vector.load %arg7[%c0_14, %c0_15] : memref<1x128xf32, #tpu.memory_space<vmem>>, vector<1x128xf32>
    %26 = vector.broadcast %25 : vector<1x128xf32> to vector<8x128xf32>
    %27 = arith.addf %24, %26 : vector<8x128xf32>
    %cst_16 = arith.constant 0.000000e+00 : f32
    %28 = vector.broadcast %cst_16 : f32 to vector<8x128xf32>
    %29 = arith.maximumf %27, %28 : vector<8x128xf32>
    %30 = arith.truncf %29 : vector<8x128xf32> to vector<8x128xbf16>
    %c0_17 = arith.constant 0 : index
    %c0_18 = arith.constant 0 : index
    %31 = vector.load %arg8[%c0_17, %c0_18] : memref<128x128xbf16, #tpu.memory_space<vmem>>, vector<128x128xbf16>
    %cst_19 = arith.constant dense<0.000000e+00> : vector<8x128xf32>
    %32 = tpu.matmul %30, %31, %cst_19 {dimension_numbers = #tpu.dot_dimension_numbers<[1], [0], [0], [1], [0, 0, 1, 1], [], []>} : vector<8x128xbf16>, vector<128x128xbf16>, vector<8x128xf32> -> vector<8x128xf32>
    %c0_20 = arith.constant 0 : index
    %c0_21 = arith.constant 0 : index
    %33 = vector.load %arg9[%c0_20, %c0_21] : memref<1x128xf32, #tpu.memory_space<vmem>>, vector<1x128xf32>
    %34 = vector.broadcast %33 : vector<1x128xf32> to vector<8x128xf32>
    %35 = arith.addf %32, %34 : vector<8x128xf32>
    %36 = tpu.iota {dimensions = array<i32: 1>} : vector<8x128xi32>
    %c4_i32 = arith.constant 4 : i32
    %37 = vector.broadcast %c4_i32 : i32 to vector<8x128xi32>
    %38 = arith.cmpi slt, %36, %37 : vector<8x128xi32>
    %cst_22 = arith.constant -1.000000e+30 : f32
    %39 = vector.broadcast %cst_22 : f32 to vector<8x128xf32>
    %40 = arith.select %38, %35, %39 : vector<8x128xi1>, vector<8x128xf32>
    %cst_23 = arith.constant dense<0xFF800000> : vector<8xf32>
    %41 = vector.multi_reduction <maximumf>, %40, %cst_23 [1] : vector<8x128xf32> to vector<8xf32>
    %42 = vector.shape_cast %41 : vector<8xf32> to vector<8x1xf32>
    %43 = vector.broadcast %42 : vector<8x1xf32> to vector<8x128xf32>
    %44 = arith.subf %40, %43 : vector<8x128xf32>
    %45 = math.exp %44 : vector<8x128xf32>
    %cst_24 = arith.constant dense<0.000000e+00> : vector<8xf32>
    %46 = vector.multi_reduction <add>, %45, %cst_24 [1] : vector<8x128xf32> to vector<8xf32>
    %47 = vector.shape_cast %46 : vector<8xf32> to vector<8x1xf32>
    %48 = vector.broadcast %47 : vector<8x1xf32> to vector<8x128xf32>
    %49 = arith.divf %45, %48 : vector<8x128xf32>
    %c0_25 = arith.constant 0 : index
    %c0_26 = arith.constant 0 : index
    %50 = vector.load %arg10[%c0_25, %c0_26] : memref<8x128xf32, #tpu.memory_space<vmem>>, vector<8x128xf32>
    tpu.vector_store %arg10[%c0_25, %c0_26], %49 {strides = array<i32>} : memref<8x128xf32, #tpu.memory_space<vmem>>, vector<8x128xf32>,
    return
  }
  func.func @transform_0(%arg0: i32) -> (i32, i32) {
    %c0_i32 = arith.constant 0 : i32
    %c0_i32_0 = arith.constant 0 : i32
    return %arg0, %c0_i32 : i32, i32
  }
  func.func @transform_1(%arg0: i32) -> (i32, i32) {
    %c0_i32 = arith.constant 0 : i32
    %c0_i32_0 = arith.constant 0 : i32
    return %arg0, %c0_i32 : i32, i32
  }
  func.func @transform_2(%arg0: i32) -> (i32, i32) {
    %c0_i32 = arith.constant 0 : i32
    %c0_i32_0 = arith.constant 0 : i32
    %c0_i32_1 = arith.constant 0 : i32
    return %c0_i32, %c0_i32_0 : i32, i32
  }
  func.func @transform_3(%arg0: i32) -> (i32, i32) {
    %c0_i32 = arith.constant 0 : i32
    %c0_i32_0 = arith.constant 0 : i32
    %c0_i32_1 = arith.constant 0 : i32
    return %c0_i32, %c0_i32_0 : i32, i32
  }
  func.func @transform_4(%arg0: i32) -> (i32, i32) {
    %c0_i32 = arith.constant 0 : i32
    %c0_i32_0 = arith.constant 0 : i32
    %c0_i32_1 = arith.constant 0 : i32
    return %c0_i32, %c0_i32_0 : i32, i32
  }
  func.func @transform_5(%arg0: i32) -> (i32, i32) {
    %c0_i32 = arith.constant 0 : i32
    %c0_i32_0 = arith.constant 0 : i32
    %c0_i32_1 = arith.constant 0 : i32
    return %c0_i32, %c0_i32_0 : i32, i32
  }
  func.func @transform_6(%arg0: i32) -> (i32, i32) {
    %c0_i32 = arith.constant 0 : i32
    %c0_i32_0 = arith.constant 0 : i32
    %c0_i32_1 = arith.constant 0 : i32
    return %c0_i32, %c0_i32_0 : i32, i32
  }
  func.func @transform_7(%arg0: i32) -> (i32, i32) {
    %c0_i32 = arith.constant 0 : i32
    %c0_i32_0 = arith.constant 0 : i32
    %c0_i32_1 = arith.constant 0 : i32
    return %c0_i32, %c0_i32_0 : i32, i32
  }
  func.func @transform_8(%arg0: i32) -> (i32, i32) {
    %c0_i32 = arith.constant 0 : i32
    %c0_i32_0 = arith.constant 0 : i32
    %c0_i32_1 = arith.constant 0 : i32
    return %c0_i32, %c0_i32_0 : i32, i32
  }
  func.func @transform_9(%arg0: i32) -> (i32, i32) {
    %c0_i32 = arith.constant 0 : i32
    %c0_i32_0 = arith.constant 0 : i32
    return %arg0, %c0_i32 : i32, i32
  }
}

</mosaic_0001>

<llo_original>
// kernel: reinforce_forward.1
$region0: #{reinforce_forward.1}
  #allocation0 [shape = 'u32[]', space=smem, size = 0x4, offset = 0x4, fixed_abs, tag = 'smem constant byte address 0x4 - core index']
  #allocation1 [shape = 'u32[144,128]{1,0:T(1,128)}', space=vmem, size = 0x12000, scoped, tag = 'internal scratch']
  %s0 = inlined_call_operand.vmem [shape: f32[8,16], index: 0, kind: input, shape index: {}]
  %s1 = inlined_call_operand.vmem [shape: f32[8,2], index: 1, kind: input, shape index: {}]
  %s2 = inlined_call_operand.vmem [shape: bf16[16,128], index: 2, kind: input, shape index: {}]
  %s3 = inlined_call_operand.vmem [shape: f32[2,128], index: 3, kind: input, shape index: {}]
  %s4 = inlined_call_operand.vmem [shape: f32[1,128], index: 4, kind: input, shape index: {}]
  %s5 = inlined_call_operand.hbm [shape: bf16[128,128], index: 5, kind: input, shape index: {}]
  %s6 = inlined_call_operand.vmem [shape: f32[1,128], index: 6, kind: input, shape index: {}]
  %s7 = inlined_call_operand.hbm [shape: bf16[128,128], index: 7, kind: input, shape index: {}]
  %s8 = inlined_call_operand.vmem [shape: f32[1,128], index: 8, kind: input, shape index: {}]
  %s9 = inlined_call_operand.vmem [shape: f32[8,128], index: 9, kind: output, shape index: {}]
  %s10 = sld [smem:[#allocation0]]
  $region54: #{reinforce_forward.1} parent=0
    _
  %s12 = ssub.s32 1, %s10
  %s13 = scalar_select 0, %s12, %s10
  $region1: #{reinforce_forward.1} parent=0
    #allocation2 [shape = 'u8[32768]{0}', space=vmem, size = 0x8000, scoped, tag = 'input window, operand 5, single buffered']
    #allocation3 [shape = 's32[1]{0}', space=sflag, size = 0x4, scoped, tag = 'scoped memory for reinforce_forward.1']
    #allocation4 [shape = 'u8[32768]{0}', space=vmem, size = 0x8000, scoped, tag = 'input window, operand 7, single buffered']
    #allocation5 [shape = 's32[1]{0}', space=sflag, size = 0x4, scoped, tag = 'scoped memory for reinforce_forward.1']
    %14 = vsyncpa [#allocation3], 0
    %15 = vsyncpa [#allocation5], 0
    // Predicated region
    $region2: #{reinforce_forward.1} parent=1 // pred_check
      _
    $region3: #{reinforce_forward.1} parent=1 // pred_check_branch
      %17 = sbr.rel (0) target = $region5
    $region4: #{reinforce_forward.1} parent=1 // pred_region
      _
    $region5: #{reinforce_forward.1} parent=1 // pred_fallthru
      _
    // Predicated region
    $region6: #{reinforce_forward.1} parent=1 // pred_check
      _
    $region7: #{reinforce_forward.1} parent=1 // pred_check_branch
      %19 = sbr.rel (0) target = $region9
    $region8: #{reinforce_forward.1} parent=1 // pred_region
      _
    $region9: #{reinforce_forward.1} parent=1 // pred_fallthru
      _
    // Predicated region
    $region10: #{reinforce_forward.1} parent=1 // pred_check
      _
    $region11: #{reinforce_forward.1} parent=1 // pred_check_branch
      %21 = sbr.rel (0) target = $region13
    $region12: #{reinforce_forward.1} parent=1 // pred_region
      _
    $region13: #{reinforce_forward.1} parent=1 // pred_fallthru
      _
    // Predicated region
    $region14: #{reinforce_forward.1} parent=1 // pred_check
      _
    $region15: #{reinforce_forward.1} parent=1 // pred_check_branch
      %23 = sbr.rel (0) target = $region17
    $region16: #{reinforce_forward.1} parent=1 // pred_region
      _
    $region17: #{reinforce_forward.1} parent=1 // pred_fallthru
      _
    // Predicated region
    $region18: #{reinforce_forward.1} parent=1 // pred_check
      _
    $region19: #{reinforce_forward.1} parent=1 // pred_check_branch
      %25 = sbr.rel (0) target = $region21
    $region20: #{reinforce_forward.1} parent=1 // pred_region
      _
    $region21: #{reinforce_forward.1} parent=1 // pred_fallthru
      _
    // Predicated region
    $region22: #{reinforce_forward.1} parent=1 // pred_check
      _
    $region23: #{reinforce_forward.1} parent=1 // pred_check_branch
      %27 = sbr.rel (0) target = $region25
    $region24: #{reinforce_forward.1} parent=1 // pred_region
      %s29 = ssub.s32 1024, 1024
      %30 = vsyncadd [#allocation3], %s29
      %s31 = sshll.u32 [#allocation2], 4
      %s32 = int_to_ptr.vmem [resolvable:$true] %s31
      %37 = dma.hbm_to_vmem [thread:$0]  %s5, 1024, %s32, [#allocation3], 64, 64, 4
    $region25: #{reinforce_forward.1} parent=1 // pred_fallthru
      _
    // Predicated region
    $region26: #{reinforce_forward.1} parent=1 // pred_check
      _
    $region27: #{reinforce_forward.1} parent=1 // pred_check_branch
      %39 = sbr.rel (0) target = $region29
    $region28: #{reinforce_forward.1} parent=1 // pred_region
      _
    $region29: #{reinforce_forward.1} parent=1 // pred_fallthru
      _
    // Predicated region
    $region30: #{reinforce_forward.1} parent=1 // pred_check
      _
    $region31: #{reinforce_forward.1} parent=1 // pred_check_branch
      %41 = sbr.rel (0) target = $region33
    $region32: #{reinforce_forward.1} parent=1 // pred_region
      %s43 = ssub.s32 1024, 1024
      %44 = vsyncadd [#allocation5], %s43
      %s45 = sshll.u32 [#allocation4], 4
      %s46 = int_to_ptr.vmem [resolvable:$true] %s45
      %51 = dma.hbm_to_vmem [thread:$0]  %s7, 1024, %s46, [#allocation5], 64, 64, 4
    $region33: #{reinforce_forward.1} parent=1 // pred_fallthru
      _
    // Predicated region
    $region34: #{reinforce_forward.1} parent=1 // pred_check
      _
    $region35: #{reinforce_forward.1} parent=1 // pred_check_branch
      %53 = sbr.rel (0) target = $region37
    $region36: #{reinforce_forward.1} parent=1 // pred_region
      _
    $region37: #{reinforce_forward.1} parent=1 // pred_fallthru
      _
    // Predicated region
    $region38: #{reinforce_forward.1} parent=1 // pred_check
      _
    $region39: #{reinforce_forward.1} parent=1 // pred_check_branch
      %55 = sbr.rel (0) target = $region41
    $region40: #{reinforce_forward.1} parent=1 // pred_region
      %56 = dma.done [#allocation3], 1024
    $region41: #{reinforce_forward.1} parent=1 // pred_fallthru
      _
    // Predicated region
    $region42: #{reinforce_forward.1} parent=1 // pred_check
      _
    $region43: #{reinforce_forward.1} parent=1 // pred_check_branch
      %58 = sbr.rel (0) target = $region45
    $region44: #{reinforce_forward.1} parent=1 // pred_region
      %59 = dma.done [#allocation5], 1024
    $region45: #{reinforce_forward.1} parent=1 // pred_fallthru
      _
    %v61 = vld [vmem:[%s0] sm:$0xff]
    %v62 = vpack.c.bf16 %v61, %v61
    %v63 = vld [vmem:[%s2] sm:$0xf]
    %v64 = vld [vmem:[%s2 + $0x4] sm:$0xf]
    %v65 = vld [vmem:[%s1] sm:$0xff]
    %v66 = vld [vmem:[%s3] sm:$0x1]
    %68 = vset.pattern.permute.xlu0 0
    %69 = vperm.xlu0 %68, %v65
    %v70 = vpop.permute.xlu0 %69
    %v72 = vlaneseq
    %v73 = vshrl.u32 %v72, 7
    %v74 = vsub.s32 0, %v73
    %v75 = vrot.slane %v66, %v74
    %v76 = vmul.f32 %v70, %v75
    %v79 = vunpack.c.l.b16 %v63
    %v80 = vunpack.c.l.b16 %v64
    %v81 = vpack.c.b16 %v80, %v79
    %vm83 = vcmask 130048
    %v85 = vsel %vm83, %v62, 0
    %87 = vmatprep.subr.bf16.mxu0 0
    %88 = vmatpush1.bf16.msra.mxu0 %v81
    %89 = vmatprep.subr.bf16.mxu0 0
    %90 = vmatpush1.bf16.msra.mxu0 0
    %91 = vmatprep.subr.bf16.mxu0 0
    %92 = vmatpush1.bf16.msra.mxu0 0
    %93 = vmatprep.subr.bf16.mxu0 0
    %94 = vmatpush1.bf16.msra.mxu0 0
    %95 = vmatprep.subr.bf16.mxu0 0
    %96 = vmatpush1.bf16.msra.mxu0 0
    %97 = vmatprep.subr.bf16.mxu0 0
    %98 = vmatpush1.bf16.msra.mxu0 0
    %99 = vmatprep.subr.bf16.mxu0 0
    %100 = vmatpush1.bf16.msra.mxu0 0
    %101 = vmatprep.subr.bf16.mxu0 0
    %102 = vmatpush1.bf16.msra.mxu0 0
    %103 = vmatprep.subr.bf16.mxu0 0
    %104 = vmatpush1.bf16.msra.mxu0 0
    %105 = vmatprep.subr.bf16.mxu0 0
    %106 = vmatpush1.bf16.msra.mxu0 0
    %107 = vmatprep.subr.bf16.mxu0 0
    %108 = vmatpush1.bf16.msra.mxu0 0
    %109 = vmatprep.subr.bf16.mxu0 0
    %110 = vmatpush1.bf16.msra.mxu0 0
    %111 = vmatprep.subr.bf16.mxu0 0
    %112 = vmatpush1.bf16.msra.mxu0 0
    %113 = vmatprep.subr.bf16.mxu0 0
    %114 = vmatpush1.bf16.msra.mxu0 0
    %115 = vmatprep.subr.bf16.mxu0 0
    %116 = vmatpush1.bf16.msra.mxu0 0
    %117 = vmatprep.subr.bf16.mxu0 0
    %118 = vmatpush1.bf16.msra.mxu0 0
    %119 = vmatprep.mubr.bf16.mxu0 0
    %120 = vmatmul.mubr.bf16.gmra.mrb[0].mxu0 %v85
    %v121 = vpop.f32.mrb[0].mxu0
    %v122 = vadd.f32 %v76, %v121
    %v123 = vpop.f32.mrb[0].mxu0
    %v124 = vpop.f32.mrb[0].mxu0
    %v125 = vpop.f32.mrb[0].mxu0
    %126 = vdwg.mxu0
    %v127 = vld [vmem:[%s3 + $0x1] sm:$0x1]
    %128 = vset.pattern.permute.xlu0 1
    %129 = vperm.xlu0 %128, %v65
    %v130 = vpop.permute.xlu0 %129
    %v132 = vlaneseq
    %v133 = vshrl.u32 %v132, 7
    %v134 = vsub.s32 0, %v133
    %v135 = vrot.slane %v127, %v134
    %v136 = vmul.f32 %v130, %v135
    %v137 = vadd.f32 %v122, %v136
    %v138 = vld [vmem:[%s4] sm:$0x1]
    %v140 = vlaneseq
    %v141 = vshrl.u32 %v140, 7
    %v142 = vsub.s32 0, %v141
    %v143 = vrot.slane %v138, %v142
    %v145 = vadd.f32 %v137, %v143
    %v146 = vmax.f32 %v145, 0.0
    %v147 = vpack.c.bf16 %v146, %v146
    %v148 = vld [vmem:[#allocation2] sm:$0xf]
    %v149 = vld [vmem:[#allocation2 + $0x4] sm:$0xf]
    %v150 = vld [vmem:[#allocation2 + $0x8] sm:$0xf]
    %v151 = vld [vmem:[#allocation2 + $0xc] sm:$0xf]
    %v152 = vld [vmem:[#allocation2 + $0x10] sm:$0xf]
    %v153 = vld [vmem:[#allocation2 + $0x14] sm:$0xf]
    %v154 = vld [vmem:[#allocation2 + $0x18] sm:$0xf]
    %v155 = vld [vmem:[#allocation2 + $0x1c] sm:$0xf]
    %v156 = vld [vmem:[#allocation2 + $0x20] sm:$0xf]
    %v157 = vld [vmem:[#allocation2 + $0x24] sm:$0xf]
    %v158 = vld [vmem:[#allocation2 + $0x28] sm:$0xf]
    %v159 = vld [vmem:[#allocation2 + $0x2c] sm:$0xf]
    %v160 = vld [vmem:[#allocation2 + $0x30] sm:$0xf]
    %v161 = vld [vmem:[#allocation2 + $0x34] sm:$0xf]
    %v162 = vld [vmem:[#allocation2 + $0x38] sm:$0xf]
    %v163 = vld [vmem:[#allocation2 + $0x3c] sm:$0xf]
    %v164 = vld [vmem:[%s6] sm:$0x1]
    %v166 = vlaneseq
    %v167 = vshrl.u32 %v166, 7
    %v168 = vsub.s32 0, %v167
    %v169 = vrot.slane %v164, %v168
    %v187 = vunpack.c.l.b16 %v148
    %v188 = vunpack.c.l.b16 %v149
    %v189 = vunpack.c.l.b16 %v150
    %v190 = vunpack.c.l.b16 %v151
    %v191 = vunpack.c.l.b16 %v152
    %v192 = vunpack.c.l.b16 %v153
    %v193 = vunpack.c.l.b16 %v154
    %v194 = vunpack.c.l.b16 %v155
    %v195 = vunpack.c.l.b16 %v156
    %v196 = vunpack.c.l.b16 %v157
    %v197 = vunpack.c.l.b16 %v158
    %v198 = vunpack.c.l.b16 %v159
    %v199 = vunpack.c.l.b16 %v160
    %v200 = vunpack.c.l.b16 %v161
    %v201 = vunpack.c.l.b16 %v162
    %v202 = vunpack.c.l.b16 %v163
    %v203 = vpack.c.b16 %v188, %v187
    %v204 = vpack.c.b16 %v190, %v189
    %v205 = vpack.c.b16 %v192, %v191
    %v206 = vpack.c.b16 %v194, %v193
    %v207 = vpack.c.b16 %v196, %v195
    %v208 = vpack.c.b16 %v198, %v197
    %v209 = vpack.c.b16 %v200, %v199
    %v210 = vpack.c.b16 %v202, %v201
    %219 = vmatprep.subr.bf16.mxu0 0
    %220 = vmatpush1.bf16.msra.mxu0 %v203
    %221 = vmatprep.subr.bf16.mxu0 0
    %222 = vmatpush1.bf16.msra.mxu0 %v204
    %223 = vmatprep.subr.bf16.mxu0 0
    %224 = vmatpush1.bf16.msra.mxu0 %v205
    %225 = vmatprep.subr.bf16.mxu0 0
    %226 = vmatpush1.bf16.msra.mxu0 %v206
    %227 = vmatprep.subr.bf16.mxu0 0
    %228 = vmatpush1.bf16.msra.mxu0 %v207
    %229 = vmatprep.subr.bf16.mxu0 0
    %230 = vmatpush1.bf16.msra.mxu0 %v208
    %231 = vmatprep.subr.bf16.mxu0 0
    %232 = vmatpush1.bf16.msra.mxu0 %v209
    %233 = vmatprep.subr.bf16.mxu0 0
    %234 = vmatpush1.bf16.msra.mxu0 %v210
    %235 = vmatprep.subr.bf16.mxu0 0
    %236 = vmatpush1.bf16.msra.mxu0 0
    %237 = vmatprep.subr.bf16.mxu0 0
    %238 = vmatpush1.bf16.msra.mxu0 0
    %239 = vmatprep.subr.bf16.mxu0 0
    %240 = vmatpush1.bf16.msra.mxu0 0
    %241 = vmatprep.subr.bf16.mxu0 0
    %242 = vmatpush1.bf16.msra.mxu0 0
    %243 = vmatprep.subr.bf16.mxu0 0
    %244 = vmatpush1.bf16.msra.mxu0 0
    %245 = vmatprep.subr.bf16.mxu0 0
    %246 = vmatpush1.bf16.msra.mxu0 0
    %247 = vmatprep.subr.bf16.mxu0 0
    %248 = vmatpush1.bf16.msra.mxu0 0
    %249 = vmatprep.subr.bf16.mxu0 0
    %250 = vmatpush1.bf16.msra.mxu0 0
    %251 = vmatprep.mubr.bf16.mxu0 0
    %252 = vmatmul.mubr.bf16.gmra.mrb[0].mxu0 %v147
    %v253 = vpop.f32.mrb[0].mxu0
    %v254 = vadd.f32 %v169, %v253
    %v255 = vpop.f32.mrb[0].mxu0
    %v256 = vpop.f32.mrb[0].mxu0
    %v257 = vpop.f32.mrb[0].mxu0
    %258 = vdwg.mxu0
    %v259 = vmax.f32 %v254, 0.0
    %v260 = vpack.c.bf16 %v259, %v259
    %v261 = vld [vmem:[#allocation4] sm:$0xf]
    %v262 = vld [vmem:[#allocation4 + $0x4] sm:$0xf]
    %v263 = vld [vmem:[#allocation4 + $0x8] sm:$0xf]
    %v264 = vld [vmem:[#allocation4 + $0xc] sm:$0xf]
    %v265 = vld [vmem:[#allocation4 + $0x10] sm:$0xf]
    %v266 = vld [vmem:[#allocation4 + $0x14] sm:$0xf]
    %v267 = vld [vmem:[#allocation4 + $0x18] sm:$0xf]
    %v268 = vld [vmem:[#allocation4 + $0x1c] sm:$0xf]
    %v269 = vld [vmem:[#allocation4 + $0x20] sm:$0xf]
    %v270 = vld [vmem:[#allocation4 + $0x24] sm:$0xf]
    %v271 = vld [vmem:[#allocation4 + $0x28] sm:$0xf]
    %v272 = vld [vmem:[#allocation4 + $0x2c] sm:$0xf]
    %v273 = vld [vmem:[#allocation4 + $0x30] sm:$0xf]
    %v274 = vld [vmem:[#allocation4 + $0x34] sm:$0xf]
    %v275 = vld [vmem:[#allocation4 + $0x38] sm:$0xf]
    %v276 = vld [vmem:[#allocation4 + $0x3c] sm:$0xf]
    %v277 = vld [vmem:[%s8] sm:$0x1]
    %v279 = vlaneseq
    %v280 = vshrl.u32 %v279, 7
    %v281 = vsub.s32 0, %v280
    %v282 = vrot.slane %v277, %v281
    %v300 = vunpack.c.l.b16 %v261
    %v301 = vunpack.c.l.b16 %v262
    %v302 = vunpack.c.l.b16 %v263
    %v303 = vunpack.c.l.b16 %v264
    %v304 = vunpack.c.l.b16 %v265
    %v305 = vunpack.c.l.b16 %v266
    %v306 = vunpack.c.l.b16 %v267
    %v307 = vunpack.c.l.b16 %v268
    %v308 = vunpack.c.l.b16 %v269
    %v309 = vunpack.c.l.b16 %v270
    %v310 = vunpack.c.l.b16 %v271
    %v311 = vunpack.c.l.b16 %v272
    %v312 = vunpack.c.l.b16 %v273
    %v313 = vunpack.c.l.b16 %v274
    %v314 = vunpack.c.l.b16 %v275
    %v315 = vunpack.c.l.b16 %v276
    %v316 = vpack.c.b16 %v301, %v300
    %v317 = vpack.c.b16 %v303, %v302
    %v318 = vpack.c.b16 %v305, %v304
    %v319 = vpack.c.b16 %v307, %v306
    %v320 = vpack.c.b16 %v309, %v308
    %v321 = vpack.c.b16 %v311, %v310
    %v322 = vpack.c.b16 %v313, %v312
    %v323 = vpack.c.b16 %v315, %v314
    %332 = vmatprep.subr.bf16.mxu0 0
    %333 = vmatpush1.bf16.msra.mxu0 %v316
    %334 = vmatprep.subr.bf16.mxu0 0
    %335 = vmatpush1.bf16.msra.mxu0 %v317
    %336 = vmatprep.subr.bf16.mxu0 0
    %337 = vmatpush1.bf16.msra.mxu0 %v318
    %338 = vmatprep.subr.bf16.mxu0 0
    %339 = vmatpush1.bf16.msra.mxu0 %v319
    %340 = vmatprep.subr.bf16.mxu0 0
    %341 = vmatpush1.bf16.msra.mxu0 %v320
    %342 = vmatprep.subr.bf16.mxu0 0
    %343 = vmatpush1.bf16.msra.mxu0 %v321
    %344 = vmatprep.subr.bf16.mxu0 0
    %345 = vmatpush1.bf16.msra.mxu0 %v322
    %346 = vmatprep.subr.bf16.mxu0 0
    %347 = vmatpush1.bf16.msra.mxu0 %v323
    %348 = vmatprep.subr.bf16.mxu0 0
    %349 = vmatpush1.bf16.msra.mxu0 0
    %350 = vmatprep.subr.bf16.mxu0 0
    %351 = vmatpush1.bf16.msra.mxu0 0
    %352 = vmatprep.subr.bf16.mxu0 0
    %353 = vmatpush1.bf16.msra.mxu0 0
    %354 = vmatprep.subr.bf16.mxu0 0
    %355 = vmatpush1.bf16.msra.mxu0 0
    %356 = vmatprep.subr.bf16.mxu0 0
    %357 = vmatpush1.bf16.msra.mxu0 0
    %358 = vmatprep.subr.bf16.mxu0 0
    %359 = vmatpush1.bf16.msra.mxu0 0
    %360 = vmatprep.subr.bf16.mxu0 0
    %361 = vmatpush1.bf16.msra.mxu0 0
    %362 = vmatprep.subr.bf16.mxu0 0
    %363 = vmatpush1.bf16.msra.mxu0 0
    %364 = vmatprep.mubr.bf16.mxu0 0
    %365 = vmatmul.mubr.bf16.gmra.mrb[0].mxu0 %v260
    %v366 = vpop.f32.mrb[0].mxu0
    %v367 = vadd.f32 %v282, %v366
    %v368 = vpop.f32.mrb[0].mxu0
    %v369 = vpop.f32.mrb[0].mxu0
    %v370 = vpop.f32.mrb[0].mxu0
    %371 = vdwg.mxu0
    %v372 = vlaneseq
    %v373 = vand.u32 %v372, 127
    %vm374 = vcmp.lt.s32.totalorder %v373, 4
    %v375 = vsel %vm374, %v367, -1e+30
    %376 = vmax.xlane.f32.xlu0 %v375
    %v377 = vpop.xlane.xlu0 %376
    %v378 = vsub.f32 %v375, %v377
    %v379 = vmul.f32 %v378, 1.442695
    %v380 = vpow.pop %v379
    %381 = vadd.xlane.f32.xlu0 %v380
    %v382 = vpop.xlane.xlu0 %381
    %v383 = vrcp.pop %v382
    %v384 = vmul.f32 %v380, %v383
    %385 = vst [vmem:[%s9] sm:$0xff] %v384
    // Predicated region
    $region46: #{reinforce_forward.1} parent=1 // pred_check
      _
    $region47: #{reinforce_forward.1} parent=1 // pred_check_branch
      %387 = sbr.rel (0) target = $region49
    $region48: #{reinforce_forward.1} parent=1 // pred_region
      _
    $region49: #{reinforce_forward.1} parent=1 // pred_fallthru
      _
    // Predicated region
    $region50: #{reinforce_forward.1} parent=1 // pred_check
      _
    $region51: #{reinforce_forward.1} parent=1 // pred_check_branch
      %389 = sbr.rel (0) target = $region53
    $region52: #{reinforce_forward.1} parent=1 // pred_region
      _
    $region53: #{reinforce_forward.1} parent=1 // pred_fallthru
      _
    %390 = vsyncpa [#allocation3], 1
    %391 = vsyncpa [#allocation5], 1

</llo_original>
